<compile_context>
chip_gen: v7x
topology: tpu7x:2x2x1
jax: 0.10.0
libtpu: 0.0.40
codegen_flags: <defaults>
</compile_context>

<pallas_src>
import jax
import jax.numpy as jnp
from jax.experimental import pallas as pl
from jax.experimental.pallas import tpu as pltpu


def _round_up(a, m):
    return (a + m - 1) // m * m


def _aft_full_kernel(xq_ref, xk_ref, wq_ref, wkv_ref, bq_ref, bkv_ref, epos_ref,
                     o_ref, acc_ref, m_ref):
    ki = pl.program_id(2)

    @pl.when(ki == 0)
    def _():
        acc_ref[...] = jnp.zeros_like(acc_ref)
        m_ref[...] = jnp.full_like(m_ref, -jnp.inf)

    dim_p = m_ref.shape[-1]

    # Fused K|V projection for this source-token (key) tile, f32 accumulate.
    xk = xk_ref[0]                                                       # (T, dim_p)
    kv = jnp.dot(xk, wkv_ref[...], preferred_element_type=jnp.float32) + bkv_ref[...]
    k_t = kv[:, :dim_p]                                                  # (T, dim_p)
    v_t = kv[:, dim_p:]                                                  # (T, dim_p)

    # Online per-channel max of k over source tokens: stabilizes exp(k); the
    # shift cancels exactly in num/den.
    m_old = m_ref[...]                                                   # (1, dim_p)
    m_new = jnp.maximum(m_old, jnp.max(k_t, axis=0, keepdims=True))
    scale = jnp.exp(m_old - m_new)                                       # (1, dim_p)
    acc_ref[...] = acc_ref[...] * jnp.concatenate([scale, scale], axis=-1)
    m_ref[...] = m_new

    exp_k = jnp.exp(k_t - m_new)                                         # (T, dim_p)
    rhs = jnp.concatenate([exp_k * v_t, exp_k], axis=-1)                 # (T, 2*dim_p)

    # Single fused (num | den) matmul on the MXU: bf16 operands, f32 accumulation.
    acc_ref[...] += jnp.dot(epos_ref[...], rhs.astype(jnp.bfloat16),
                            preferred_element_type=jnp.float32)

    @pl.when(ki == pl.num_programs(2) - 1)
    def _():
        q = jnp.dot(xq_ref[0], wq_ref[...],
                    preferred_element_type=jnp.float32) + bq_ref[...]    # (T, dim_p)
        acc = acc_ref[...]
        num = acc[:, :dim_p]
        den = acc[:, dim_p:]
        out = jax.nn.sigmoid(q) * num * pl.reciprocal(den, approx=True)
        o_ref[0] = out.astype(o_ref.dtype)


def aft_full_forward(x, wq, wk, wv, bq, bk, bv, pos, res=False, tile=256):
    """x: (b, c, h, w, d) float32.  Weights pre-transposed to (in, out)."""
    b, c, h, w, d = x.shape
    n = h * w * d
    dim = c
    assert pos.shape == (n, n), "position_biases must be (n, n) with n = h*w*d"

    # Glue: flatten spatial dims, channels last -> (b, n, dim).
    x_tok = jnp.transpose(x.reshape(b, c, n), (0, 2, 1)).astype(jnp.float32)

    # Pad channels to a lane-dense multiple of 128; pick token tile T and pad n.
    dim_p = _round_up(dim, 128)
    t = tile if n > tile else _round_up(n, 16)
    n_pad = _round_up(n, t)

    x_p = jnp.pad(x_tok, ((0, 0), (0, n_pad - n), (0, dim_p - dim)))

    def pad_w(wm):
        return jnp.pad(wm, ((0, dim_p - dim), (0, dim_p - dim)))

    wq_p = pad_w(wq)
    wkv_p = jnp.concatenate([pad_w(wk), pad_w(wv)], axis=1)              # (dim_p, 2*dim_p)
    bq_p = jnp.pad(bq, (0, dim_p - dim)).reshape(1, dim_p)
    bkv_p = jnp.concatenate([jnp.pad(bk, (0, dim_p - dim)),
                             jnp.pad(bv, (0, dim_p - dim))]).reshape(1, 2 * dim_p)

    # exp(pos) computed once (row-max shifted: cancels in num/den), streamed bf16.
    # Padded key columns are zero -> padded source tokens contribute nothing.
    pos_s = pos - jnp.max(pos, axis=1, keepdims=True)
    epos = jnp.pad(jnp.exp(pos_s),
                   ((0, n_pad - n), (0, n_pad - n))).astype(jnp.bfloat16)

    grid = (b, n_pad // t, n_pad // t)

    out_tok = pl.pallas_call(
        _aft_full_kernel,
        out_shape=jax.ShapeDtypeStruct((b, n_pad, dim_p), jnp.float32),
        grid_spec=pltpu.PrefetchScalarGridSpec(
            num_scalar_prefetch=0,
            grid=grid,
            in_specs=[
                pl.BlockSpec((1, t, dim_p), lambda bi, qi, ki: (bi, qi, 0)),   # x, query tile
                pl.BlockSpec((1, t, dim_p), lambda bi, qi, ki: (bi, ki, 0)),   # x, key tile
                pl.BlockSpec((dim_p, dim_p), lambda bi, qi, ki: (0, 0)),       # Wq
                pl.BlockSpec((dim_p, 2 * dim_p), lambda bi, qi, ki: (0, 0)),   # [Wk | Wv]
                pl.BlockSpec((1, dim_p), lambda bi, qi, ki: (0, 0)),           # bq
                pl.BlockSpec((1, 2 * dim_p), lambda bi, qi, ki: (0, 0)),       # [bk | bv]
                pl.BlockSpec((t, t), lambda bi, qi, ki: (qi, ki)),             # exp(pos), bf16
            ],
            out_specs=pl.BlockSpec((1, t, dim_p), lambda bi, qi, ki: (bi, qi, 0)),
            scratch_shapes=[
                pltpu.VMEM((t, 2 * dim_p), jnp.float32),   # [num | den] f32 accumulator
                pltpu.VMEM((1, dim_p), jnp.float32),       # running per-channel max of k
            ],
        ),
        compiler_params=pltpu.CompilerParams(
            dimension_semantics=("parallel", "parallel", "arbitrary")),
    )(x_p, x_p, wq_p, wkv_p, bq_p, bkv_p, epos)

    # Glue: drop padding, (b, n, dim) -> (b, c, h, w, d).
    out_tok = out_tok[:, :n, :dim]
    out = jnp.transpose(out_tok, (0, 2, 1)).reshape(b, c, h, w, d).astype(x.dtype)
    if res:
        out = out + x
    return out


def aft_full_reference(x, wq, wk, wv, bq, bk, bv, pos, res=False):
    """Pure-JAX reference matching the PyTorch forward (f32 throughout)."""
    b, c, h, w, d = x.shape
    n = h * w * d
    x_tok = jnp.transpose(x.reshape(b, c, n), (0, 2, 1))
    q = x_tok @ wq + bq
    k = x_tok @ wk + bk
    v = x_tok @ wv + bv
    wgt = jnp.exp(k[:, None, :, :] + pos[None, :, :, None])     # (b, t, s, c)
    num = jnp.sum(wgt * v[:, None, :, :], axis=2)
    den = jnp.sum(wgt, axis=2)
    out = jax.nn.sigmoid(q) * num / den
    out = jnp.transpose(out, (0, 2, 1)).reshape(b, c, h, w, d)
    if res:
        out = out + x
    return out


def init_params(key, d_model, n):
    """Matches the PyTorch module init: Linear weight ~ N(0, 0.001), bias = 0;
       position_biases = ones (simple=False)."""
    k1, k2, k3 = jax.random.split(key, 3)
    std = 0.001
    # PyTorch Linear stores weight as (out, in) and computes x @ W.T; pre-transpose.
    wq = (jax.random.normal(k1, (d_model, d_model), jnp.float32) * std).T
    wk = (jax.random.normal(k2, (d_model, d_model), jnp.float32) * std).T
    wv = (jax.random.normal(k3, (d_model, d_model), jnp.float32) * std).T
    bq = jnp.zeros((d_model,), jnp.float32)
    bk = jnp.zeros((d_model,), jnp.float32)
    bv = jnp.zeros((d_model,), jnp.float32)
    pos = jnp.ones((n, n), jnp.float32)
    return wq, wk, wv, bq, bk, bv, pos


if __name__ == "__main__":
    # Small shapes consistent with the module: b=2, d_model=c=32, spatial 2x2x2 -> n=8.
    b, c, h, w, d = 2, 32, 2, 2, 2
    n = h * w * d

    key = jax.random.PRNGKey(0)
    kx, kp = jax.random.split(key)
    x = jax.random.normal(kx, (b, c, h, w, d), jnp.float32)
    params = init_params(kp, c, n)

    out = aft_full_forward(x, *params, res=False)
    out = jax.block_until_ready(out)
    assert out.shape == (b, c, h, w, d)

    ref = aft_full_reference(x, *params, res=False)
    max_err = float(jnp.max(jnp.abs(out - ref)))
    assert jnp.allclose(out, ref, atol=1e-4, rtol=2e-2), f"max abs err = {max_err}"

    print("KERNEL_OK")
</pallas_src>

<mosaic_0001>
module attributes {stable_mosaic.version = 11 : i64} {
  func.func @_aft_full_kernel(%arg0: i32, %arg1: i32, %arg2: i32, %arg3: memref<1x16x128xf32, #tpu.memory_space<vmem>>, %arg4: memref<1x16x128xf32, #tpu.memory_space<vmem>>, %arg5: memref<128x128xf32, #tpu.memory_space<vmem>>, %arg6: memref<128x256xf32, #tpu.memory_space<vmem>>, %arg7: memref<1x128xf32, #tpu.memory_space<vmem>>, %arg8: memref<1x256xf32, #tpu.memory_space<vmem>>, %arg9: memref<16x16xbf16, #tpu.memory_space<vmem>>, %arg10: memref<1x16x128xf32, #tpu.memory_space<vmem>>, %arg11: memref<16x256xf32, #tpu.memory_space<vmem>>, %arg12: memref<1x128xf32, #tpu.memory_space<vmem>>) attributes {dimension_semantics = [#tpu.dimension_semantics<parallel>, #tpu.dimension_semantics<parallel>, #tpu.dimension_semantics<arbitrary>], iteration_bounds = array<i64: 2, 1, 1>, scalar_prefetch = 0 : i64, scratch_operands = 2 : i64, tpu.core_type = #tpu.core_type<tc>, window_params = [{transform_indices = @transform_0, window_bounds = array<i64: 1, 16, 128>}, {transform_indices = @transform_1, window_bounds = array<i64: 1, 16, 128>}, {pipeline_mode = #tpu.pipeline_mode<synchronous>, transform_indices = @transform_2, window_bounds = array<i64: 128, 128>}, {pipeline_mode = #tpu.pipeline_mode<synchronous>, transform_indices = @transform_3, window_bounds = array<i64: 128, 256>}, {pipeline_mode = #tpu.pipeline_mode<synchronous>, transform_indices = @transform_4, window_bounds = array<i64: 1, 128>}, {pipeline_mode = #tpu.pipeline_mode<synchronous>, transform_indices = @transform_5, window_bounds = array<i64: 1, 256>}, {transform_indices = @transform_6, window_bounds = array<i64: 16, 16>}, {transform_indices = @transform_7, window_bounds = array<i64: 1, 16, 128>}]} {
    %c0_i32 = arith.constant 0 : i32
    %0 = arith.cmpi eq, %arg2, %c0_i32 : i32
    %1 = arith.extui %0 : i1 to i32
    %c0_i32_0 = arith.constant 0 : i32
    %2 = arith.cmpi ne, %1, %c0_i32_0 : i32
    scf.if %2 {
      %cst_25 = arith.constant 0.000000e+00 : f32
      %38 = vector.broadcast %cst_25 : f32 to vector<16x256xf32>
      %c0_26 = arith.constant 0 : index
      %c0_27 = arith.constant 0 : index
      %39 = vector.load %arg11[%c0_26, %c0_27] : memref<16x256xf32, #tpu.memory_space<vmem>>, vector<16x256xf32>
      tpu.vector_store %arg11[%c0_26, %c0_27], %38 {strides = array<i32>} : memref<16x256xf32, #tpu.memory_space<vmem>>, vector<16x256xf32>,
      %cst_28 = arith.constant 0xFF800000 : f32
      %40 = vector.broadcast %cst_28 : f32 to vector<1x128xf32>
      %c0_29 = arith.constant 0 : index
      %c0_30 = arith.constant 0 : index
      %41 = vector.load %arg12[%c0_29, %c0_30] : memref<1x128xf32, #tpu.memory_space<vmem>>, vector<1x128xf32>
      tpu.vector_store %arg12[%c0_29, %c0_30], %40 {strides = array<i32>} : memref<1x128xf32, #tpu.memory_space<vmem>>, vector<1x128xf32>,
    } else {
    }
    %c0 = arith.constant 0 : index
    %c0_1 = arith.constant 0 : index
    %c0_2 = arith.constant 0 : index
    %3 = vector.load %arg4[%c0, %c0_1, %c0_2] : memref<1x16x128xf32, #tpu.memory_space<vmem>>, vector<1x16x128xf32>
    %4 = vector.shape_cast %3 : vector<1x16x128xf32> to vector<16x128xf32>
    %c0_3 = arith.constant 0 : index
    %c0_4 = arith.constant 0 : index
    %5 = vector.load %arg6[%c0_3, %c0_4] : memref<128x256xf32, #tpu.memory_space<vmem>>, vector<128x256xf32>
    %cst = arith.constant dense<0.000000e+00> : vector<16x256xf32>
    %6 = tpu.matmul %4, %5, %cst {dimension_numbers = #tpu.dot_dimension_numbers<[1], [0], [0], [1], [0, 0, 1, 1], [], []>} : vector<16x128xf32>, vector<128x256xf32>, vector<16x256xf32> -> vector<16x256xf32>
    %c0_5 = arith.constant 0 : index
    %c0_6 = arith.constant 0 : index
    %7 = vector.load %arg8[%c0_5, %c0_6] : memref<1x256xf32, #tpu.memory_space<vmem>>, vector<1x256xf32>
    %8 = vector.broadcast %7 : vector<1x256xf32> to vector<16x256xf32>
    %9 = arith.addf %6, %8 : vector<16x256xf32>
    %10 = vector.extract_strided_slice %9 {offsets = [0, 0], sizes = [16, 128], strides = [1, 1]} : vector<16x256xf32> to vector<16x128xf32>
    %11 = vector.extract_strided_slice %9 {offsets = [0, 128], sizes = [16, 128], strides = [1, 1]} : vector<16x256xf32> to vector<16x128xf32>
    %c0_7 = arith.constant 0 : index
    %c0_8 = arith.constant 0 : index
    %12 = vector.load %arg12[%c0_7, %c0_8] : memref<1x128xf32, #tpu.memory_space<vmem>>, vector<1x128xf32>
    %cst_9 = arith.constant dense<0xFF800000> : vector<128xf32>
    %13 = vector.multi_reduction <maximumf>, %10, %cst_9 [0] : vector<16x128xf32> to vector<128xf32>
    %14 = vector.shape_cast %13 : vector<128xf32> to vector<1x128xf32>
    %15 = arith.maximumf %12, %14 : vector<1x128xf32>
    %16 = arith.subf %12, %15 : vector<1x128xf32>
    %17 = math.exp %16 : vector<1x128xf32>
    %c0_10 = arith.constant 0 : index
    %c0_11 = arith.constant 0 : index
    %18 = vector.load %arg11[%c0_10, %c0_11] : memref<16x256xf32, #tpu.memory_space<vmem>>, vector<16x256xf32>
    %19 = tpu.concatenate %17, %17 in 1 : vector<1x128xf32>, vector<1x128xf32> -> vector<1x256xf32>
    %20 = vector.broadcast %19 : vector<1x256xf32> to vector<16x256xf32>
    %21 = arith.mulf %18, %20 : vector<16x256xf32>
    %c0_12 = arith.constant 0 : index
    %c0_13 = arith.constant 0 : index
    %22 = vector.load %arg11[%c0_12, %c0_13] : memref<16x256xf32, #tpu.memory_space<vmem>>, vector<16x256xf32>
    tpu.vector_store %arg11[%c0_12, %c0_13], %21 {strides = array<i32>} : memref<16x256xf32, #tpu.memory_space<vmem>>, vector<16x256xf32>,
    %c0_14 = arith.constant 0 : index
    %c0_15 = arith.constant 0 : index
    %23 = vector.load %arg12[%c0_14, %c0_15] : memref<1x128xf32, #tpu.memory_space<vmem>>, vector<1x128xf32>
    tpu.vector_store %arg12[%c0_14, %c0_15], %15 {strides = array<i32>} : memref<1x128xf32, #tpu.memory_space<vmem>>, vector<1x128xf32>,
    %24 = vector.broadcast %15 : vector<1x128xf32> to vector<16x128xf32>
    %25 = arith.subf %10, %24 : vector<16x128xf32>
    %26 = math.exp %25 : vector<16x128xf32>
    %27 = arith.mulf %26, %11 : vector<16x128xf32>
    %28 = tpu.concatenate %27, %26 in 1 : vector<16x128xf32>, vector<16x128xf32> -> vector<16x256xf32>
    %c0_16 = arith.constant 0 : index
    %c0_17 = arith.constant 0 : index
    %29 = vector.load %arg11[%c0_16, %c0_17] : memref<16x256xf32, #tpu.memory_space<vmem>>, vector<16x256xf32>
    %c0_18 = arith.constant 0 : index
    %c0_19 = arith.constant 0 : index
    %30 = vector.load %arg9[%c0_18, %c0_19] : memref<16x16xbf16, #tpu.memory_space<vmem>>, vector<16x16xbf16>
    %31 = arith.truncf %28 : vector<16x256xf32> to vector<16x256xbf16>
    %cst_20 = arith.constant dense<0.000000e+00> : vector<16x256xf32>
    %32 = tpu.matmul %30, %31, %cst_20 {dimension_numbers = #tpu.dot_dimension_numbers<[1], [0], [0], [1], [0, 0, 1, 1], [], []>} : vector<16x16xbf16>, vector<16x256xbf16>, vector<16x256xf32> -> vector<16x256xf32>
    %33 = arith.addf %29, %32 : vector<16x256xf32>
    %c0_21 = arith.constant 0 : index
    %c0_22 = arith.constant 0 : index
    %34 = vector.load %arg11[%c0_21, %c0_22] : memref<16x256xf32, #tpu.memory_space<vmem>>, vector<16x256xf32>
    tpu.vector_store %arg11[%c0_21, %c0_22], %33 {strides = array<i32>} : memref<16x256xf32, #tpu.memory_space<vmem>>, vector<16x256xf32>,
    %c0_i32_23 = arith.constant 0 : i32
    %35 = arith.cmpi eq, %arg2, %c0_i32_23 : i32
    %36 = arith.extui %35 : i1 to i32
    %c0_i32_24 = arith.constant 0 : i32
    %37 = arith.cmpi ne, %36, %c0_i32_24 : i32
    scf.if %37 {
      %c0_25 = arith.constant 0 : index
      %c0_26 = arith.constant 0 : index
      %c0_27 = arith.constant 0 : index
      %38 = vector.load %arg3[%c0_25, %c0_26, %c0_27] : memref<1x16x128xf32, #tpu.memory_space<vmem>>, vector<1x16x128xf32>
      %39 = vector.shape_cast %38 : vector<1x16x128xf32> to vector<16x128xf32>
      %c0_28 = arith.constant 0 : index
      %c0_29 = arith.constant 0 : index
      %40 = vector.load %arg5[%c0_28, %c0_29] : memref<128x128xf32, #tpu.memory_space<vmem>>, vector<128x128xf32>
      %cst_30 = arith.constant dense<0.000000e+00> : vector<16x128xf32>
      %41 = tpu.matmul %39, %40, %cst_30 {dimension_numbers = #tpu.dot_dimension_numbers<[1], [0], [0], [1], [0, 0, 1, 1], [], []>} : vector<16x128xf32>, vector<128x128xf32>, vector<16x128xf32> -> vector<16x128xf32>
      %c0_31 = arith.constant 0 : index
      %c0_32 = arith.constant 0 : index
      %42 = vector.load %arg7[%c0_31, %c0_32] : memref<1x128xf32, #tpu.memory_space<vmem>>, vector<1x128xf32>
      %43 = vector.broadcast %42 : vector<1x128xf32> to vector<16x128xf32>
      %44 = arith.addf %41, %43 : vector<16x128xf32>
      %c0_33 = arith.constant 0 : index
      %c0_34 = arith.constant 0 : index
      %45 = vector.load %arg11[%c0_33, %c0_34] : memref<16x256xf32, #tpu.memory_space<vmem>>, vector<16x256xf32>
      %46 = vector.extract_strided_slice %45 {offsets = [0, 0], sizes = [16, 128], strides = [1, 1]} : vector<16x256xf32> to vector<16x128xf32>
      %47 = vector.extract_strided_slice %45 {offsets = [0, 128], sizes = [16, 128], strides = [1, 1]} : vector<16x256xf32> to vector<16x128xf32>
      %48 = arith.negf %44 : vector<16x128xf32>
      %49 = math.exp %48 : vector<16x128xf32>
      %cst_35 = arith.constant 1.000000e+00 : f32
      %50 = vector.broadcast %cst_35 : f32 to vector<16x128xf32>
      %51 = arith.addf %50, %49 : vector<16x128xf32>
      %52 = arith.divf %50, %51 : vector<16x128xf32>
      %53 = arith.mulf %52, %46 : vector<16x128xf32>
      %54 = tpu.reciprocal %47 {approx = true} : vector<16x128xf32> -> vector<16x128xf32>
      %55 = arith.mulf %53, %54 : vector<16x128xf32>
      %c0_36 = arith.constant 0 : index
      %c0_37 = arith.constant 0 : index
      %c0_38 = arith.constant 0 : index
      %56 = vector.load %arg10[%c0_36, %c0_37, %c0_38] : memref<1x16x128xf32, #tpu.memory_space<vmem>>, vector<1x16x128xf32>
      %57 = vector.shape_cast %56 : vector<1x16x128xf32> to vector<16x128xf32>
      %58 = vector.shape_cast %55 : vector<16x128xf32> to vector<1x16x128xf32>
      tpu.vector_store %arg10[%c0_36, %c0_37, %c0_38], %58 {strides = array<i32>} : memref<1x16x128xf32, #tpu.memory_space<vmem>>, vector<1x16x128xf32>,
    } else {
    }
    return
  }
  func.func @transform_0(%arg0: i32, %arg1: i32, %arg2: i32) -> (i32, i32, i32) {
    %c0_i32 = arith.constant 0 : i32
    %c0_i32_0 = arith.constant 0 : i32
    return %arg0, %arg1, %c0_i32 : i32, i32, i32
  }
  func.func @transform_1(%arg0: i32, %arg1: i32, %arg2: i32) -> (i32, i32, i32) {
    %c0_i32 = arith.constant 0 : i32
    %c0_i32_0 = arith.constant 0 : i32
    return %arg0, %arg2, %c0_i32 : i32, i32, i32
  }
  func.func @transform_2(%arg0: i32, %arg1: i32, %arg2: i32) -> (i32, i32) {
    %c0_i32 = arith.constant 0 : i32
    %c0_i32_0 = arith.constant 0 : i32
    %c0_i32_1 = arith.constant 0 : i32
    return %c0_i32, %c0_i32_0 : i32, i32
  }
  func.func @transform_3(%arg0: i32, %arg1: i32, %arg2: i32) -> (i32, i32) {
    %c0_i32 = arith.constant 0 : i32
    %c0_i32_0 = arith.constant 0 : i32
    %c0_i32_1 = arith.constant 0 : i32
    return %c0_i32, %c0_i32_0 : i32, i32
  }
  func.func @transform_4(%arg0: i32, %arg1: i32, %arg2: i32) -> (i32, i32) {
    %c0_i32 = arith.constant 0 : i32
    %c0_i32_0 = arith.constant 0 : i32
    %c0_i32_1 = arith.constant 0 : i32
    return %c0_i32, %c0_i32_0 : i32, i32
  }
  func.func @transform_5(%arg0: i32, %arg1: i32, %arg2: i32) -> (i32, i32) {
    %c0_i32 = arith.constant 0 : i32
    %c0_i32_0 = arith.constant 0 : i32
    %c0_i32_1 = arith.constant 0 : i32
    return %c0_i32, %c0_i32_0 : i32, i32
  }
  func.func @transform_6(%arg0: i32, %arg1: i32, %arg2: i32) -> (i32, i32) {
    %c0_i32 = arith.constant 0 : i32
    return %arg1, %arg2 : i32, i32
  }
  func.func @transform_7(%arg0: i32, %arg1: i32, %arg2: i32) -> (i32, i32, i32) {
    %c0_i32 = arith.constant 0 : i32
    %c0_i32_0 = arith.constant 0 : i32
    return %arg0, %arg1, %c0_i32 : i32, i32, i32
  }
}

</mosaic_0001>

<llo_original>
// kernel: tpu_custom_call.1
$region0: #{tpu_custom_call.1}
  #allocation0 [shape = 'u32[]', space=smem, size = 0x4, offset = 0x4, fixed_abs, tag = 'smem constant byte address 0x4 - core index']
  #allocation1 [shape = 'u32[144,128]{1,0:T(1,128)}', space=vmem, size = 0x12000, scoped, tag = 'internal scratch']
  #allocation2 [shape = 'f32[16,256]{1,0:T(8,128)}', space=vmem, size = 0x4000, scoped, tag = 'scratch operand']
  #allocation3 [shape = 'f32[1,128]{1,0:T(1,128)}', space=vmem, size = 0x200, scoped, tag = 'scratch operand']
  %s0 = inlined_call_operand.hbm [shape: f32[2,16,128], index: 0, kind: input, shape index: {}]
  %s1 = inlined_call_operand.hbm [shape: f32[2,16,128], index: 1, kind: input, shape index: {}]
  %s2 = inlined_call_operand.hbm [shape: f32[128,128], index: 2, kind: input, shape index: {}]
  %s3 = inlined_call_operand.hbm [shape: f32[128,256], index: 3, kind: input, shape index: {}]
  %s4 = inlined_call_operand.vmem [shape: f32[1,128], index: 4, kind: input, shape index: {}]
  %s5 = inlined_call_operand.vmem [shape: f32[1,256], index: 5, kind: input, shape index: {}]
  %s6 = inlined_call_operand.vmem [shape: bf16[16,16], index: 6, kind: input, shape index: {}]
  %s7 = inlined_call_operand.hbm [shape: f32[2,16,128], index: 7, kind: output, shape index: {}]
  %s8 = sld [smem:[#allocation0]]
  $region85: #{tpu_custom_call.1} parent=0
    _
  %s10 = ssub.s32 1, %s8
  %s11 = scalar_select 0, %s10, %s8
  $region1: #{tpu_custom_call.1} parent=0
    #allocation4 [shape = 'u8[16384]{0}', space=vmem, size = 0x4000, scoped, tag = 'input window, operand 0']
    #allocation5 [shape = 's32[2]{0}', space=sflag, size = 0x8, scoped, tag = 'scoped memory for tpu_custom_call.1']
    #allocation6 [shape = 's32[2]{0}', space=sflag, size = 0x8, scoped, tag = 'scoped memory for tpu_custom_call.1']
    #allocation7 [shape = 'u8[16384]{0}', space=vmem, size = 0x4000, scoped, tag = 'input window, operand 1']
    #allocation8 [shape = 's32[2]{0}', space=sflag, size = 0x8, scoped, tag = 'scoped memory for tpu_custom_call.1']
    #allocation9 [shape = 'u8[65536]{0}', space=vmem, size = 0x10000, scoped, tag = 'input window, operand 2, single buffered']
    #allocation10 [shape = 'u8[131072]{0}', space=vmem, size = 0x20000, scoped, tag = 'input window, operand 3, single buffered']
    #allocation11 [shape = 's32[1]{0}', space=sflag, size = 0x4, scoped, tag = 'scoped memory for tpu_custom_call.1']
    #allocation12 [shape = 'u8[16384]{0}', space=vmem, size = 0x4000, scoped, tag = 'output window, operand 0']
    %12 = vsyncpa [#allocation5], 0
    %s13 = scalar_lea.sflag [#allocation5], 1
    %14 = vsyncpa %s13, 0
    %15 = vsyncpa [#allocation8], 0
    %s16 = scalar_lea.sflag [#allocation8], 1
    %17 = vsyncpa %s16, 0
    %18 = vsyncpa [#allocation11], 0
    %19 = vsyncpa [#allocation6], 0
    %s20 = scalar_lea.sflag [#allocation6], 1
    %21 = vsyncpa %s20, 0
    loop: start=0, step=1, limit=4
    $region2: #{tpu_custom_call.1} parent=1 // loop_pre_header
      _
    $region3: #{tpu_custom_call.1} parent=1 // loop_header
      %s23 = sphi 0, %s27
      %p24 = scmp.ge.s32.totalorder %s23, 4
      %s30 = sphi 0, %s49
      %s31 = sphi 0, %s45
      %s32 = sphi 0, %s41
      %s33 = sphi 0, %s30
      %s34 = sphi 0, %s31
      %s35 = sphi 0, %s32
      %s36 = sphi 0, %s33
      %s37 = sphi 0, %s34
      %s38 = sphi 0, %s35
      %s54 = sphi 0, %s56
      %s57 = sphi 0, %s54
      %s58 = sphi 0, %s57
      %s74 = sphi 0, %s58
      %s82 = sphi 0, %s84
      %s85 = sphi 0, %s82
      %s86 = sphi 0, %s85
      %s102 = sphi 0, %s86
      %s106 = sphi 0, %s106
      %s108 = sphi 0, %s106
      %s109 = sphi 0, %s108
      %s123 = sphi 0, %s109
      %s127 = sphi 0, %s127
      %s129 = sphi 0, %s127
      %s130 = sphi 0, %s129
      %s144 = sphi 0, %s130
      %s148 = sphi 0, %s148
      %s150 = sphi 0, %s148
      %s151 = sphi 0, %s150
      %s165 = sphi 0, %s151
      %s169 = sphi 0, %s169
      %s171 = sphi 0, %s169
      %s172 = sphi 0, %s171
      %s186 = sphi 0, %s172
      %s194 = sphi 0, %s196
      %s197 = sphi 0, %s194
      %s198 = sphi 0, %s197
      %s214 = sphi 0, %s198
      %s222 = sphi 0, %s224
      %s225 = sphi 0, %s222
      %s226 = sphi 0, %s225
      %s242 = sphi 0, %s226
    $region4: #{tpu_custom_call.1} parent=1 // loop_header_branch
      %26 = sbr.rel (%p24) target = $region8
    $region5: #{tpu_custom_call.1} parent=1 // loop_body
      %s28 = ssub.s32 %s23, 1
      %s29 = ssub.s32 %s23, 2
      %s39 = sadd.s32 1, %s32
      %p40 = scmp.ge.s32.totalorder %s39, 1
      %s41 = scalar_select %p40, 0, %s39
      %s42 = sadd.s32 1, %s31
      %s43 = scalar_select %p40, %s42, %s31
      %p44 = scmp.ge.s32.totalorder %s43, 1
      %s45 = scalar_select %p44, 0, %s43
      %s46 = sadd.s32 1, %s30
      %s47 = scalar_select %p44, %s46, %s30
      %p48 = scmp.ge.s32.totalorder %s47, 2
      %s49 = scalar_select %p48, 0, %s47
      %s50 = ssub.s32 %s30, %s49
      %s51 = ssub.s32 %s31, %s45
      %s52 = sor.u32 %s50, %s51
      %p53 = scmp.eq.s32.totalorder %s52, 0
      %s55 = sadd.s32 %s54, 1
      %s56 = scalar_select %p53, %s54, %s55
      %p59 = pneg %p53
      %p60 = scmp.eq.s32.totalorder %s23, 1
      %p61 = por %p59, %p60
      %p62 = scmp.ne.s32.totalorder %s54, %s57
      %p63 = scmp.eq.s32.totalorder %s23, 0
      %p64 = por %p62, %p63
      %p65 = scmp.ne.s32.totalorder %s54, %s57
      %p66 = scmp.eq.s32.totalorder %s28, 1
      %p67 = por %p65, %p66
      %p68 = scmp.ne.s32.totalorder %s57, %s58
      %p69 = scmp.eq.s32.totalorder %s28, 0
      %p70 = por %p68, %p69
      %p71 = scmp.ne.s32.totalorder %s57, %s58
      %p72 = scmp.eq.s32.totalorder %s29, 1
      %p73 = por %p71, %p72
      %p75 = scmp.ne.s32.totalorder %s58, %s74
      %p76 = scmp.eq.s32.totalorder %s29, 0
      %p77 = por %p75, %p76
      %s78 = ssub.s32 %s30, %s49
      %s79 = ssub.s32 %s32, %s41
      %s80 = sor.u32 %s78, %s79
      %p81 = scmp.eq.s32.totalorder %s80, 0
      %s83 = sadd.s32 %s82, 1
      %s84 = scalar_select %p81, %s82, %s83
      %p87 = pneg %p81
      %p88 = scmp.eq.s32.totalorder %s23, 1
      %p89 = por %p87, %p88
      %p90 = scmp.ne.s32.totalorder %s82, %s85
      %p91 = scmp.eq.s32.totalorder %s23, 0
      %p92 = por %p90, %p91
      %p93 = scmp.ne.s32.totalorder %s82, %s85
      %p94 = scmp.eq.s32.totalorder %s28, 1
      %p95 = por %p93, %p94
      %p96 = scmp.ne.s32.totalorder %s85, %s86
      %p97 = scmp.eq.s32.totalorder %s28, 0
      %p98 = por %p96, %p97
      %p99 = scmp.ne.s32.totalorder %s85, %s86
      %p100 = scmp.eq.s32.totalorder %s29, 1
      %p101 = por %p99, %p100
      %p103 = scmp.ne.s32.totalorder %s86, %s102
      %p104 = scmp.eq.s32.totalorder %s29, 0
      %p105 = por %p103, %p104
      %s107 = sadd.s32 %s106, 1
      %p110 = scmp.eq.s32.totalorder %s23, 1
      %p111 = scmp.ne.s32.totalorder %s106, %s108
      %p112 = scmp.eq.s32.totalorder %s23, 0
      %p113 = por %p111, %p112
      %p114 = scmp.ne.s32.totalorder %s106, %s108
      %p115 = scmp.eq.s32.totalorder %s28, 1
      %p116 = por %p114, %p115
      %p117 = scmp.ne.s32.totalorder %s108, %s109
      %p118 = scmp.eq.s32.totalorder %s28, 0
      %p119 = por %p117, %p118
      %p120 = scmp.ne.s32.totalorder %s108, %s109
      %p121 = scmp.eq.s32.totalorder %s29, 1
      %p122 = por %p120, %p121
      %p124 = scmp.ne.s32.totalorder %s109, %s123
      %p125 = scmp.eq.s32.totalorder %s29, 0
      %p126 = por %p124, %p125
      %s128 = sadd.s32 %s127, 1
      %p131 = scmp.eq.s32.totalorder %s23, 1
      %p132 = scmp.ne.s32.totalorder %s127, %s129
      %p133 = scmp.eq.s32.totalorder %s23, 0
      %p134 = por %p132, %p133
      %p135 = scmp.ne.s32.totalorder %s127, %s129
      %p136 = scmp.eq.s32.totalorder %s28, 1
      %p137 = por %p135, %p136
      %p138 = scmp.ne.s32.totalorder %s129, %s130
      %p139 = scmp.eq.s32.totalorder %s28, 0
      %p140 = por %p138, %p139
      %p141 = scmp.ne.s32.totalorder %s129, %s130
      %p142 = scmp.eq.s32.totalorder %s29, 1
      %p143 = por %p141, %p142
      %p145 = scmp.ne.s32.totalorder %s130, %s144
      %p146 = scmp.eq.s32.totalorder %s29, 0
      %p147 = por %p145, %p146
      %s149 = sadd.s32 %s148, 1
      %p152 = scmp.eq.s32.totalorder %s23, 1
      %p153 = scmp.ne.s32.totalorder %s148, %s150
      %p154 = scmp.eq.s32.totalorder %s23, 0
      %p155 = por %p153, %p154
      %p156 = scmp.ne.s32.totalorder %s148, %s150
      %p157 = scmp.eq.s32.totalorder %s28, 1
      %p158 = por %p156, %p157
      %p159 = scmp.ne.s32.totalorder %s150, %s151
      %p160 = scmp.eq.s32.totalorder %s28, 0
      %p161 = por %p159, %p160
      %p162 = scmp.ne.s32.totalorder %s150, %s151
      %p163 = scmp.eq.s32.totalorder %s29, 1
      %p164 = por %p162, %p163
      %p166 = scmp.ne.s32.totalorder %s151, %s165
      %p167 = scmp.eq.s32.totalorder %s29, 0
      %p168 = por %p166, %p167
      %s170 = sadd.s32 %s169, 1
      %p173 = scmp.eq.s32.totalorder %s23, 1
      %p174 = scmp.ne.s32.totalorder %s169, %s171
      %p175 = scmp.eq.s32.totalorder %s23, 0
      %p176 = por %p174, %p175
      %p177 = scmp.ne.s32.totalorder %s169, %s171
      %p178 = scmp.eq.s32.totalorder %s28, 1
      %p179 = por %p177, %p178
      %p180 = scmp.ne.s32.totalorder %s171, %s172
      %p181 = scmp.eq.s32.totalorder %s28, 0
      %p182 = por %p180, %p181
      %p183 = scmp.ne.s32.totalorder %s171, %s172
      %p184 = scmp.eq.s32.totalorder %s29, 1
      %p185 = por %p183, %p184
      %p187 = scmp.ne.s32.totalorder %s172, %s186
      %p188 = scmp.eq.s32.totalorder %s29, 0
      %p189 = por %p187, %p188
      %s190 = ssub.s32 %s31, %s45
      %s191 = ssub.s32 %s32, %s41
      %s192 = sor.u32 %s190, %s191
      %p193 = scmp.eq.s32.totalorder %s192, 0
      %s195 = sadd.s32 %s194, 1
      %s196 = scalar_select %p193, %s194, %s195
      %p199 = pneg %p193
      %p200 = scmp.eq.s32.totalorder %s23, 1
      %p201 = por %p199, %p200
      %p202 = scmp.ne.s32.totalorder %s194, %s197
      %p203 = scmp.eq.s32.totalorder %s23, 0
      %p204 = por %p202, %p203
      %p205 = scmp.ne.s32.totalorder %s194, %s197
      %p206 = scmp.eq.s32.totalorder %s28, 1
      %p207 = por %p205, %p206
      %p208 = scmp.ne.s32.totalorder %s197, %s198
      %p209 = scmp.eq.s32.totalorder %s28, 0
      %p210 = por %p208, %p209
      %p211 = scmp.ne.s32.totalorder %s197, %s198
      %p212 = scmp.eq.s32.totalorder %s29, 1
      %p213 = por %p211, %p212
      %p215 = scmp.ne.s32.totalorder %s198, %s214
      %p216 = scmp.eq.s32.totalorder %s29, 0
      %p217 = por %p215, %p216
      %s218 = ssub.s32 %s30, %s49
      %s219 = ssub.s32 %s31, %s45
      %s220 = sor.u32 %s218, %s219
      %p221 = scmp.eq.s32.totalorder %s220, 0
      %s223 = sadd.s32 %s222, 1
      %s224 = scalar_select %p221, %s222, %s223
      %p227 = pneg %p221
      %p228 = scmp.eq.s32.totalorder %s23, 1
      %p229 = por %p227, %p228
      %p230 = scmp.ne.s32.totalorder %s222, %s225
      %p231 = scmp.eq.s32.totalorder %s23, 0
      %p232 = por %p230, %p231
      %p233 = scmp.ne.s32.totalorder %s222, %s225
      %p234 = scmp.eq.s32.totalorder %s28, 1
      %p235 = por %p233, %p234
      %p236 = scmp.ne.s32.totalorder %s225, %s226
      %p237 = scmp.eq.s32.totalorder %s28, 0
      %p238 = por %p236, %p237
      %p239 = scmp.ne.s32.totalorder %s225, %s226
      %p240 = scmp.eq.s32.totalorder %s29, 1
      %p241 = por %p239, %p240
      %p243 = scmp.ne.s32.totalorder %s226, %s242
      %p244 = scmp.eq.s32.totalorder %s29, 0
      %p245 = por %p243, %p244
      %p246 = scmp.le.s32.totalorder 1, %s23
      %p247 = scmp.lt.s32.totalorder %s23, 3
      %p248 = pnand %p246, %p247
      %p249 = pneg %p248
      // Predicated region
      $region9: #{tpu_custom_call.1} parent=5 // pred_check
        _
      $region10: #{tpu_custom_call.1} parent=5 // pred_check_branch
        %251 = sbr.rel (%p248) target = $region12
      $region11: #{tpu_custom_call.1} parent=5 // pred_region
        %s252 = ssub.s32 %s23, 1
        // Predicated region
        $region13: #{tpu_custom_call.1} parent=11 // pred_check
          %p253 = pneg %p119
        $region14: #{tpu_custom_call.1} parent=11 // pred_check_branch
          %255 = sbr.rel (%p253) target = $region16
        $region15: #{tpu_custom_call.1} parent=11 // pred_region
          %s257 = ssub.s32 2048, 2048
          %258 = vsyncadd [#allocation8], %s257
          %s259 = sshll.u32 [#allocation9], 4
          %s260 = int_to_ptr.vmem [resolvable:$true] %s259
          %265 = dma.hbm_to_vmem [thread:$0]  %s2, 2048, %s260, [#allocation8], 128, 128, 8
        $region16: #{tpu_custom_call.1} parent=11 // pred_fallthru
          _
        // Predicated region
        $region17: #{tpu_custom_call.1} parent=11 // pred_check
          %p266 = pneg %p140
        $region18: #{tpu_custom_call.1} parent=11 // pred_check_branch
          %268 = sbr.rel (%p266) target = $region20
        $region19: #{tpu_custom_call.1} parent=11 // pred_region
          %s270 = ssub.s32 4096, 4096
          %271 = vsyncadd [#allocation11], %s270
          %s272 = sshll.u32 [#allocation10], 4
          %s273 = int_to_ptr.vmem [resolvable:$true] %s272
          %278 = dma.hbm_to_vmem [thread:$0]  %s3, 4096, %s273, [#allocation11], 256, 256, 16
        $region20: #{tpu_custom_call.1} parent=11 // pred_fallthru
          _
        // Predicated region
        $region21: #{tpu_custom_call.1} parent=11 // pred_check
          %p279 = pneg %p161
        $region22: #{tpu_custom_call.1} parent=11 // pred_check_branch
          %281 = sbr.rel (%p279) target = $region24
        $region23: #{tpu_custom_call.1} parent=11 // pred_region
          _
        $region24: #{tpu_custom_call.1} parent=11 // pred_fallthru
          _
        // Predicated region
        $region25: #{tpu_custom_call.1} parent=11 // pred_check
          %p282 = pneg %p182
        $region26: #{tpu_custom_call.1} parent=11 // pred_check_branch
          %284 = sbr.rel (%p282) target = $region28
        $region27: #{tpu_custom_call.1} parent=11 // pred_region
          _
        $region28: #{tpu_custom_call.1} parent=11 // pred_fallthru
          _
        // Predicated region
        $region29: #{tpu_custom_call.1} parent=11 // pred_check
          %p285 = pneg %p210
        $region30: #{tpu_custom_call.1} parent=11 // pred_check_branch
          %287 = sbr.rel (%p285) target = $region32
        $region31: #{tpu_custom_call.1} parent=11 // pred_region
          %s288 = smul.u32 2, %s34
          %p289 = scmp.lt.s32.totalorder %s288, 1
          %s290 = scalar_select %p289, %s288, 1
          %p291 = scmp.lt.s32.totalorder %s35, 0
          %s292 = scalar_select %p291, %s35, 0
          %s293 = sadd.s32 %s292, %s290
          %s294 = smul.addr %s293, 4
          %s295 = scalar_lea.vmem %s6, %s294
          %s296 = smul.u32 2, %s34
        $region32: #{tpu_custom_call.1} parent=11 // pred_fallthru
          _
      $region12: #{tpu_custom_call.1} parent=5 // pred_fallthru
        _
      %p297 = scmp.lt.s32.totalorder %s23, 2
      // Predicated region
      $region33: #{tpu_custom_call.1} parent=5 // pred_check
        %p298 = pneg %p297
      $region34: #{tpu_custom_call.1} parent=5 // pred_check_branch
        %300 = sbr.rel (%p298) target = $region36
      $region35: #{tpu_custom_call.1} parent=5 // pred_region
        // Predicated region
        $region37: #{tpu_custom_call.1} parent=35 // pred_check
          %p301 = pneg %p64
        $region38: #{tpu_custom_call.1} parent=35 // pred_check_branch
          %303 = sbr.rel (%p301) target = $region40
        $region39: #{tpu_custom_call.1} parent=35 // pred_region
          %s304 = sand.u32 %s54, 1
          %s305 = scalar_lea.sflag [#allocation5], %s304
          %s306 = sand.u32 %s54, 1
          %s307 = smul.addr %s306, 16
          %s308 = scalar_lea.vmem [#allocation4], %s307
          %s309 = smul.u32 2, %s31
          %s311 = ssub.s32 256, 256
          %312 = vsyncadd %s305, %s311
          %s313 = smul.addr %s30, 2
          %s314 = sadd.s32 %s309, %s313
          %s315 = smul.addr %s314, 128
          %s316 = scalar_lea.hbm %s0, %s315
          %s317 = sshll.u32 %s308, 4
          %s318 = int_to_ptr.vmem [resolvable:$true] %s317
          %323 = dma.hbm_to_vmem [thread:$0]  %s316, 256, %s318, %s305, 128, 128, 8
        $region40: #{tpu_custom_call.1} parent=35 // pred_fallthru
          _
        // Predicated region
        $region41: #{tpu_custom_call.1} parent=35 // pred_check
          %p324 = pneg %p92
        $region42: #{tpu_custom_call.1} parent=35 // pred_check_branch
          %326 = sbr.rel (%p324) target = $region44
        $region43: #{tpu_custom_call.1} parent=35 // pred_region
          %s327 = sand.u32 %s23, 1
          %s328 = scalar_lea.sflag [#allocation8], %s327
          %s329 = sand.u32 %s82, 1
          %s330 = smul.addr %s329, 16
          %s331 = scalar_lea.vmem [#allocation7], %s330
          %s332 = smul.u32 2, %s32
          %s334 = ssub.s32 256, 256
          %335 = vsyncadd %s328, %s334
          %s336 = smul.addr %s30, 2
          %s337 = sadd.s32 %s332, %s336
          %s338 = smul.addr %s337, 128
          %s339 = scalar_lea.hbm %s1, %s338
          %s340 = sshll.u32 %s331, 4
          %s341 = int_to_ptr.vmem [resolvable:$true] %s340
          %346 = dma.hbm_to_vmem [thread:$0]  %s339, 256, %s341, %s328, 128, 128, 8
        $region44: #{tpu_custom_call.1} parent=35 // pred_fallthru
          _
      $region36: #{tpu_custom_call.1} parent=5 // pred_fallthru
        _
      %p347 = scmp.le.s32.totalorder 1, %s23
      %p348 = scmp.lt.s32.totalorder %s23, 3
      %p349 = pnand %p347, %p348
      %p350 = pneg %p349
      // Predicated region
      $region45: #{tpu_custom_call.1} parent=5 // pred_check
        _
      $region46: #{tpu_custom_call.1} parent=5 // pred_check_branch
        %352 = sbr.rel (%p349) target = $region48
      $region47: #{tpu_custom_call.1} parent=5 // pred_region
        %s353 = ssub.s32 %s23, 1
        %s354 = sand.u32 %s57, 1
        %s355 = scalar_lea.sflag [#allocation5], %s354
        %s356 = sand.u32 %s57, 1
        %s357 = smul.addr %s356, 16
        %s358 = scalar_lea.vmem [#allocation4], %s357
        // Predicated region
        $region49: #{tpu_custom_call.1} parent=47 // pred_check
          %p359 = pneg %p70
        $region50: #{tpu_custom_call.1} parent=47 // pred_check_branch
          %361 = sbr.rel (%p359) target = $region52
        $region51: #{tpu_custom_call.1} parent=47 // pred_region
          %362 = dma.done %s355, 256
        $region52: #{tpu_custom_call.1} parent=47 // pred_fallthru
          _
        %s363 = sand.u32 %s28, 1
        %s364 = scalar_lea.sflag [#allocation8], %s363
        %s365 = sand.u32 %s85, 1
        %s366 = smul.addr %s365, 16
        %s367 = scalar_lea.vmem [#allocation7], %s366
        // Predicated region
        $region53: #{tpu_custom_call.1} parent=47 // pred_check
          %p368 = pneg %p98
        $region54: #{tpu_custom_call.1} parent=47 // pred_check_branch
          %370 = sbr.rel (%p368) target = $region56
        $region55: #{tpu_custom_call.1} parent=47 // pred_region
          %371 = dma.done %s364, 256
        $region56: #{tpu_custom_call.1} parent=47 // pred_fallthru
          _
        // Predicated region
        $region57: #{tpu_custom_call.1} parent=47 // pred_check
          %p372 = pneg %p119
        $region58: #{tpu_custom_call.1} parent=47 // pred_check_branch
          %374 = sbr.rel (%p372) target = $region60
        $region59: #{tpu_custom_call.1} parent=47 // pred_region
          %375 = dma.done [#allocation8], 2048
        $region60: #{tpu_custom_call.1} parent=47 // pred_fallthru
          _
        // Predicated region
        $region61: #{tpu_custom_call.1} parent=47 // pred_check
          %p376 = pneg %p140
        $region62: #{tpu_custom_call.1} parent=47 // pred_check_branch
          %378 = sbr.rel (%p376) target = $region64
        $region63: #{tpu_custom_call.1} parent=47 // pred_region
          %379 = dma.done [#allocation11], 4096
        $region64: #{tpu_custom_call.1} parent=47 // pred_fallthru
          _
        %s380 = sand.u32 %s57, 1
        %s381 = scalar_lea.sflag [#allocation5], %s380
        %s382 = sand.u32 %s57, 1
        %s383 = smul.addr %s382, 16
        %s384 = scalar_lea.vmem [#allocation4], %s383
        %p385 = pneg %p70
        %p386 = pneg %p67
        %s387 = sand.u32 %s28, 1
        %s388 = scalar_lea.sflag [#allocation8], %s387
        %s389 = sand.u32 %s85, 1
        %s390 = smul.addr %s389, 16
        %s391 = scalar_lea.vmem [#allocation7], %s390
        %p392 = pneg %p98
        %p393 = pneg %p95
        %p394 = pneg %p119
        %p395 = pneg %p116
        %p396 = pneg %p140
        %p397 = pneg %p137
        %p398 = pneg %p161
        %p399 = pneg %p158
        %p400 = pneg %p182
        %p401 = pneg %p179
        %s402 = smul.u32 2, %s34
        %p403 = scmp.lt.s32.totalorder %s402, 1
        %s404 = scalar_select %p403, %s402, 1
        %p405 = scmp.lt.s32.totalorder %s35, 0
        %s406 = scalar_select %p405, %s35, 0
        %s407 = sadd.s32 %s406, %s404
        %s408 = smul.addr %s407, 4
        %s409 = scalar_lea.vmem %s6, %s408
        %p410 = pneg %p210
        %p411 = pneg %p207
        %p412 = pneg %p238
        %p413 = pneg %p235
        %s414 = sand.u32 %s225, 1
        %s415 = scalar_lea.sflag [#allocation6], %s414
        %s416 = sand.u32 %s225, 1
        %s417 = smul.addr %s416, 16
        %s418 = scalar_lea.vmem [#allocation12], %s417
        %s419 = smul.u32 2, %s34
        %s420 = smul.u32 2, %s35
        %s421 = smul.u32 2, %s34
        %p422 = scmp.lt.s32.totalorder %s421, 1
        %s423 = scalar_select %p422, %s421, 1
        %p424 = scmp.lt.s32.totalorder %s35, 0
        %s425 = scalar_select %p424, %s35, 0
        %s426 = sadd.s32 %s425, %s423
        %s427 = smul.addr %s426, 4
        %s428 = scalar_lea.vmem %s6, %s427
        %s429 = smul.u32 2, %s34
        %s430 = smul.u32 2, %s34
        %p432 = scmp.eq.s32.totalorder %s35, 0
        // Predicated region
        $region65: #{tpu_custom_call.1} parent=47 // pred_check
          %p433 = pneg %p432
        $region66: #{tpu_custom_call.1} parent=47 // pred_check_branch
          %435 = sbr.rel (%p433) target = $region68
        $region67: #{tpu_custom_call.1} parent=47 // pred_region
          %436 = vst [vmem:[#allocation2] sm:$0xff] 0.0
          %437 = vst [vmem:[#allocation2 + $0x8] sm:$0xff] 0.0
          %438 = vst [vmem:[#allocation2 + $0x10] sm:$0xff] 0.0
          %439 = vst [vmem:[#allocation2 + $0x18] sm:$0xff] 0.0
          %440 = vst [vmem:[#allocation3] sm:$0x1] -inf
        $region68: #{tpu_custom_call.1} parent=47 // pred_fallthru
          _
        %v441 = vld [vmem:[%s367] sm:$0xff]
        %v442 = vld [vmem:[%s367 + $0x8] sm:$0xff]
        %v443 = vld [vmem:[#allocation10] sm:$0xff]
        %v444 = vld [vmem:[#allocation10 + $0x8] sm:$0xff]
        %v445 = vld [vmem:[#allocation10 + $0x10] sm:$0xff]
        %v446 = vld [vmem:[#allocation10 + $0x18] sm:$0xff]
        %v447 = vld [vmem:[#allocation10 + $0x20] sm:$0xff]
        %v448 = vld [vmem:[#allocation10 + $0x28] sm:$0xff]
        %v449 = vld [vmem:[#allocation10 + $0x30] sm:$0xff]
        %v450 = vld [vmem:[#allocation10 + $0x38] sm:$0xff]
        %v451 = vld [vmem:[#allocation10 + $0x40] sm:$0xff]
        %v452 = vld [vmem:[#allocation10 + $0x48] sm:$0xff]
        %v453 = vld [vmem:[#allocation10 + $0x50] sm:$0xff]
        %v454 = vld [vmem:[#allocation10 + $0x58] sm:$0xff]
        %v455 = vld [vmem:[#allocation10 + $0x60] sm:$0xff]
        %v456 = vld [vmem:[#allocation10 + $0x68] sm:$0xff]
        %v457 = vld [vmem:[#allocation10 + $0x70] sm:$0xff]
        %v458 = vld [vmem:[#allocation10 + $0x78] sm:$0xff]
        %v459 = vld [vmem:[#allocation10 + $0x80] sm:$0xff]
        %v460 = vld [vmem:[#allocation10 + $0x88] sm:$0xff]
        %v461 = vld [vmem:[#allocation10 + $0x90] sm:$0xff]
        %v462 = vld [vmem:[#allocation10 + $0x98] sm:$0xff]
        %v463 = vld [vmem:[#allocation10 + $0xa0] sm:$0xff]
        %v464 = vld [vmem:[#allocation10 + $0xa8] sm:$0xff]
        %v465 = vld [vmem:[#allocation10 + $0xb0] sm:$0xff]
        %v466 = vld [vmem:[#allocation10 + $0xb8] sm:$0xff]
        %v467 = vld [vmem:[#allocation10 + $0xc0] sm:$0xff]
        %v468 = vld [vmem:[#allocation10 + $0xc8] sm:$0xff]
        %v469 = vld [vmem:[#allocation10 + $0xd0] sm:$0xff]
        %v470 = vld [vmem:[#allocation10 + $0xd8] sm:$0xff]
        %v471 = vld [vmem:[#allocation10 + $0xe0] sm:$0xff]
        %v472 = vld [vmem:[#allocation10 + $0xe8] sm:$0xff]
        %v473 = vld [vmem:[#allocation10 + $0xf0] sm:$0xff]
        %v474 = vld [vmem:[#allocation10 + $0xf8] sm:$0xff]
        %v475 = vld [vmem:[%s5] sm:$0x3]
        %v477 = vlaneseq
        %v478 = vshrl.u32 %v477, 7
        %v479 = vsub.s32 0, %v478
        %v480 = vrot.slane %v475, %v479
        %v481 = vlaneseq
        %v482 = vshrl.u32 %v481, 7
        %v483 = vsub.s32 1, %v482
        %v484 = vrot.slane %v475, %v483
        %487 = vmatprep.subr.mxu0 %v444
        %488 = vmatpush1.msra.mxu0 %v443
        %489 = vmatprep.subr.mxu0 %v446
        %490 = vmatpush1.msra.mxu0 %v445
        %491 = vmatprep.subr.mxu0 %v448
        %492 = vmatpush1.msra.mxu0 %v447
        %493 = vmatprep.subr.mxu0 %v450
        %494 = vmatpush1.msra.mxu0 %v449
        %495 = vmatprep.subr.mxu0 %v452
        %496 = vmatpush1.msra.mxu0 %v451
        %497 = vmatprep.subr.mxu0 %v454
        %498 = vmatpush1.msra.mxu0 %v453
        %499 = vmatprep.subr.mxu0 %v456
        %500 = vmatpush1.msra.mxu0 %v455
        %501 = vmatprep.subr.mxu0 %v458
        %502 = vmatpush1.msra.mxu0 %v457
        %503 = vmatprep.subr.mxu0 %v460
        %504 = vmatpush1.msra.mxu0 %v459
        %505 = vmatprep.subr.mxu0 %v462
        %506 = vmatpush1.msra.mxu0 %v461
        %507 = vmatprep.subr.mxu0 %v464
        %508 = vmatpush1.msra.mxu0 %v463
        %509 = vmatprep.subr.mxu0 %v466
        %510 = vmatpush1.msra.mxu0 %v465
        %511 = vmatprep.subr.mxu0 %v468
        %512 = vmatpush1.msra.mxu0 %v467
        %513 = vmatprep.subr.mxu0 %v470
        %514 = vmatpush1.msra.mxu0 %v469
        %515 = vmatprep.subr.mxu0 %v472
        %516 = vmatpush1.msra.mxu0 %v471
        %517 = vmatprep.subr.mxu0 %v474
        %518 = vmatpush1.msra.mxu0 %v473
        %519 = vmatprep.subr.mxu0 0.0
        %520 = vmatpush1.msra.mxu0 0.0
        %521 = vmatprep.subr.mxu0 0.0
        %522 = vmatpush1.msra.mxu0 0.0
        %523 = vmatprep.subr.mxu0 0.0
        %524 = vmatpush1.msra.mxu0 0.0
        %525 = vmatprep.subr.mxu0 0.0
        %526 = vmatpush1.msra.mxu0 0.0
        %527 = vmatprep.subr.mxu0 0.0
        %528 = vmatpush1.msra.mxu0 0.0
        %529 = vmatprep.subr.mxu0 0.0
        %530 = vmatpush1.msra.mxu0 0.0
        %531 = vmatprep.subr.mxu0 0.0
        %532 = vmatpush1.msra.mxu0 0.0
        %533 = vmatprep.subr.mxu0 0.0
        %534 = vmatpush1.msra.mxu0 0.0
        %535 = vmatprep.subr.mxu0 0.0
        %536 = vmatpush1.msra.mxu0 0.0
        %537 = vmatprep.subr.mxu0 0.0
        %538 = vmatpush1.msra.mxu0 0.0
        %539 = vmatprep.subr.mxu0 0.0
        %540 = vmatpush1.msra.mxu0 0.0
        %541 = vmatprep.subr.mxu0 0.0
        %542 = vmatpush1.msra.mxu0 0.0
        %543 = vmatprep.subr.mxu0 0.0
        %544 = vmatpush1.msra.mxu0 0.0
        %545 = vmatprep.subr.mxu0 0.0
        %546 = vmatpush1.msra.mxu0 0.0
        %547 = vmatprep.subr.mxu0 0.0
        %548 = vmatpush1.msra.mxu0 0.0
        %549 = vmatprep.subr.mxu0 0.0
        %550 = vmatpush1.msra.mxu0 0.0
        %551 = vmatprep.mubr.f32.mxu0 0.0
        %552 = vmatmul.mubr.f32.gmra.mrb[0].mxu0 %v441
        %v553 = vpop.f32.mrb[0].mxu0
        %v554 = vadd.f32 %v480, %v553
        %v555 = vpop.f32.mrb[0].mxu0
        %v556 = vadd.f32 %v484, %v555
        %557 = vmatprep.mubr.f32.mxu0 0.0
        %558 = vmatmul.mubr.f32.gmra.mrb[0].mxu0 %v442
        %v559 = vpop.f32.mrb[0].mxu0
        %v560 = vadd.f32 %v480, %v559
        %v561 = vpop.f32.mrb[0].mxu0
        %v562 = vadd.f32 %v484, %v561
        %563 = vdwg.mxu0
        %v564 = vld [vmem:[#allocation3] sm:$0x1]
        %v565 = vmax.f32 %v554, %v560
        %v566 = vrot.slane %v565, 4
        %v567 = vmax.f32 %v565, %v566
        %v568 = vrot.slane %v567, 2
        %v569 = vmax.f32 %v567, %v568
        %v570 = vrot.slane %v569, 1
        %v571 = vmax.f32 %v569, %v570
        %v572 = vmax.f32 %v564, %v571
        %v573 = vsub.f32 %v564, %v572
        %v574 = vmul.f32 %v573, 1.442695
        %v575 = vpow.pop %v574
        %v576 = vld [vmem:[#allocation2] sm:$0xff]
        %v577 = vld [vmem:[#allocation2 + $0x8] sm:$0xff]
        %v578 = vld [vmem:[#allocation2 + $0x10] sm:$0xff]
        %v579 = vld [vmem:[#allocation2 + $0x18] sm:$0xff]
        %v580 = vlaneseq
        %v581 = vshrl.u32 %v580, 7
        %v582 = vsub.s32 0, %v581
        %v583 = vrot.slane %v575, %v582
        %v584 = vmul.f32 %v576, %v583
        %v585 = vmul.f32 %v577, %v583
        %v586 = vmul.f32 %v578, %v583
        %v587 = vmul.f32 %v579, %v583
        %588 = vst [vmem:[#allocation2] sm:$0xff] %v584
        %589 = vst [vmem:[#allocation2 + $0x8] sm:$0xff] %v585
        %590 = vst [vmem:[#allocation2 + $0x10] sm:$0xff] %v586
        %591 = vst [vmem:[#allocation2 + $0x18] sm:$0xff] %v587
        %592 = vst [vmem:[#allocation3] sm:$0x1] %v572
        %v594 = vlaneseq
        %v595 = vshrl.u32 %v594, 7
        %v596 = vsub.s32 0, %v595
        %v597 = vrot.slane %v572, %v596
        %v599 = vsub.f32 %v554, %v597
        %v600 = vsub.f32 %v560, %v597
        %v601 = vmul.f32 %v599, 1.442695
        %v602 = vpow.pop %v601
        %v603 = vmul.f32 %v600, 1.442695
        %v604 = vpow.pop %v603
        %v605 = vmul.f32 %v602, %v556
        %v606 = vmul.f32 %v604, %v562
        %v607 = vld [vmem:[#allocation2] sm:$0xff]
        %v608 = vld [vmem:[#allocation2 + $0x8] sm:$0xff]
        %v609 = vld [vmem:[#allocation2 + $0x10] sm:$0xff]
        %v610 = vld [vmem:[#allocation2 + $0x18] sm:$0xff]
        %v611 = vld [vmem:[%s428] sm:$0xf]
        %v612 = vld [vmem:[%s428 + $0x4] sm:$0xf]
        %v613 = vpack.c.bf16 %v606, %v605
        %v614 = vpack.c.bf16 %v604, %v602
        %v617 = vunpack.c.l.b16 %v611
        %v618 = vunpack.c.l.b16 %v612
        %v619 = vpack.c.b16 %v618, %v617
        %vm620 = vcmask 130048
        %v622 = vsel %vm620, %v619, 0
        %624 = vmatprep.subr.bf16.mxu0 %v614
        %625 = vmatpush1.bf16.msra.mxu0 %v613
        %626 = vmatprep.subr.bf16.mxu0 0
        %627 = vmatpush1.bf16.msra.mxu0 0
        %628 = vmatprep.subr.bf16.mxu0 0
        %629 = vmatpush1.bf16.msra.mxu0 0
        %630 = vmatprep.subr.bf16.mxu0 0
        %631 = vmatpush1.bf16.msra.mxu0 0
        %632 = vmatprep.subr.bf16.mxu0 0
        %633 = vmatpush1.bf16.msra.mxu0 0
        %634 = vmatprep.subr.bf16.mxu0 0
        %635 = vmatpush1.bf16.msra.mxu0 0
        %636 = vmatprep.subr.bf16.mxu0 0
        %637 = vmatpush1.bf16.msra.mxu0 0
        %638 = vmatprep.subr.bf16.mxu0 0
        %639 = vmatpush1.bf16.msra.mxu0 0
        %640 = vmatprep.subr.bf16.mxu0 0
        %641 = vmatpush1.bf16.msra.mxu0 0
        %642 = vmatprep.subr.bf16.mxu0 0
        %643 = vmatpush1.bf16.msra.mxu0 0
        %644 = vmatprep.subr.bf16.mxu0 0
        %645 = vmatpush1.bf16.msra.mxu0 0
        %646 = vmatprep.subr.bf16.mxu0 0
        %647 = vmatpush1.bf16.msra.mxu0 0
        %648 = vmatprep.subr.bf16.mxu0 0
        %649 = vmatpush1.bf16.msra.mxu0 0
        %650 = vmatprep.subr.bf16.mxu0 0
        %651 = vmatpush1.bf16.msra.mxu0 0
        %652 = vmatprep.subr.bf16.mxu0 0
        %653 = vmatpush1.bf16.msra.mxu0 0
        %654 = vmatprep.subr.bf16.mxu0 0
        %655 = vmatpush1.bf16.msra.mxu0 0
        %656 = vmatprep.mubr.bf16.mxu0 0
        %657 = vmatmul.mubr.bf16.gmra.mrb[0].mxu0 %v622
        %v658 = vpop.f32.mrb[0].mxu0
        %v659 = vadd.f32 0.0, %v658
        %v660 = vpop.f32.mrb[0].mxu0
        %v661 = vadd.f32 0.0, %v660
        %v662 = vpop.f32.mrb[0].mxu0
        %v663 = vadd.f32 0.0, %v662
        %v664 = vpop.f32.mrb[0].mxu0
        %v665 = vadd.f32 0.0, %v664
        %666 = vdwg.mxu0
        %v667 = vadd.f32 %v607, %v659
        %v668 = vadd.f32 %v608, %v661
        %v669 = vadd.f32 %v609, %v663
        %v670 = vadd.f32 %v610, %v665
        %671 = vst [vmem:[#allocation2] sm:$0xff] %v667
        %672 = vst [vmem:[#allocation2 + $0x8] sm:$0xff] %v668
        %673 = vst [vmem:[#allocation2 + $0x10] sm:$0xff] %v669
        %674 = vst [vmem:[#allocation2 + $0x18] sm:$0xff] %v670
        // Predicated region
        $region69: #{tpu_custom_call.1} parent=47 // pred_check
          %p675 = pneg %p432
        $region70: #{tpu_custom_call.1} parent=47 // pred_check_branch
          %677 = sbr.rel (%p675) target = $region72
        $region71: #{tpu_custom_call.1} parent=47 // pred_region
          %v678 = vld [vmem:[%s358] sm:$0xff]
          %v679 = vld [vmem:[%s358 + $0x8] sm:$0xff]
          %v680 = vld [vmem:[#allocation9] sm:$0xff]
          %v681 = vld [vmem:[#allocation9 + $0x8] sm:$0xff]
          %v682 = vld [vmem:[#allocation9 + $0x10] sm:$0xff]
          %v683 = vld [vmem:[#allocation9 + $0x18] sm:$0xff]
          %v684 = vld [vmem:[#allocation9 + $0x20] sm:$0xff]
          %v685 = vld [vmem:[#allocation9 + $0x28] sm:$0xff]
          %v686 = vld [vmem:[#allocation9 + $0x30] sm:$0xff]
          %v687 = vld [vmem:[#allocation9 + $0x38] sm:$0xff]
          %v688 = vld [vmem:[#allocation9 + $0x40] sm:$0xff]
          %v689 = vld [vmem:[#allocation9 + $0x48] sm:$0xff]
          %v690 = vld [vmem:[#allocation9 + $0x50] sm:$0xff]
          %v691 = vld [vmem:[#allocation9 + $0x58] sm:$0xff]
          %v692 = vld [vmem:[#allocation9 + $0x60] sm:$0xff]
          %v693 = vld [vmem:[#allocation9 + $0x68] sm:$0xff]
          %v694 = vld [vmem:[#allocation9 + $0x70] sm:$0xff]
          %v695 = vld [vmem:[#allocation9 + $0x78] sm:$0xff]
          %v696 = vld [vmem:[%s4] sm:$0x1]
          %v698 = vlaneseq
          %v699 = vshrl.u32 %v698, 7
          %v700 = vsub.s32 0, %v699
          %v701 = vrot.slane %v696, %v700
          %703 = vmatprep.subr.mxu0 0.0
          %704 = vmatpush1.msra.mxu0 %v680
          %705 = vmatprep.subr.mxu0 0.0
          %706 = vmatpush1.msra.mxu0 %v681
          %707 = vmatprep.subr.mxu0 0.0
          %708 = vmatpush1.msra.mxu0 %v682
          %709 = vmatprep.subr.mxu0 0.0
          %710 = vmatpush1.msra.mxu0 %v683
          %711 = vmatprep.subr.mxu0 0.0
          %712 = vmatpush1.msra.mxu0 %v684
          %713 = vmatprep.subr.mxu0 0.0
          %714 = vmatpush1.msra.mxu0 %v685
          %715 = vmatprep.subr.mxu0 0.0
          %716 = vmatpush1.msra.mxu0 %v686
          %717 = vmatprep.subr.mxu0 0.0
          %718 = vmatpush1.msra.mxu0 %v687
          %719 = vmatprep.subr.mxu0 0.0
          %720 = vmatpush1.msra.mxu0 %v688
          %721 = vmatprep.subr.mxu0 0.0
          %722 = vmatpush1.msra.mxu0 %v689
          %723 = vmatprep.subr.mxu0 0.0
          %724 = vmatpush1.msra.mxu0 %v690
          %725 = vmatprep.subr.mxu0 0.0
          %726 = vmatpush1.msra.mxu0 %v691
          %727 = vmatprep.subr.mxu0 0.0
          %728 = vmatpush1.msra.mxu0 %v692
          %729 = vmatprep.subr.mxu0 0.0
          %730 = vmatpush1.msra.mxu0 %v693
          %731 = vmatprep.subr.mxu0 0.0
          %732 = vmatpush1.msra.mxu0 %v694
          %733 = vmatprep.subr.mxu0 0.0
          %734 = vmatpush1.msra.mxu0 %v695
          %735 = vmatprep.subr.mxu0 0.0
          %736 = vmatpush1.msra.mxu0 0.0
          %737 = vmatprep.subr.mxu0 0.0
          %738 = vmatpush1.msra.mxu0 0.0
          %739 = vmatprep.subr.mxu0 0.0
          %740 = vmatpush1.msra.mxu0 0.0
          %741 = vmatprep.subr.mxu0 0.0
          %742 = vmatpush1.msra.mxu0 0.0
          %743 = vmatprep.subr.mxu0 0.0
          %744 = vmatpush1.msra.mxu0 0.0
          %745 = vmatprep.subr.mxu0 0.0
          %746 = vmatpush1.msra.mxu0 0.0
          %747 = vmatprep.subr.mxu0 0.0
          %748 = vmatpush1.msra.mxu0 0.0
          %749 = vmatprep.subr.mxu0 0.0
          %750 = vmatpush1.msra.mxu0 0.0
          %751 = vmatprep.subr.mxu0 0.0
          %752 = vmatpush1.msra.mxu0 0.0
          %753 = vmatprep.subr.mxu0 0.0
          %754 = vmatpush1.msra.mxu0 0.0
          %755 = vmatprep.subr.mxu0 0.0
          %756 = vmatpush1.msra.mxu0 0.0
          %757 = vmatprep.subr.mxu0 0.0
          %758 = vmatpush1.msra.mxu0 0.0
          %759 = vmatprep.subr.mxu0 0.0
          %760 = vmatpush1.msra.mxu0 0.0
          %761 = vmatprep.subr.mxu0 0.0
          %762 = vmatpush1.msra.mxu0 0.0
          %763 = vmatprep.subr.mxu0 0.0
          %764 = vmatpush1.msra.mxu0 0.0
          %765 = vmatprep.subr.mxu0 0.0
          %766 = vmatpush1.msra.mxu0 0.0
          %767 = vmatprep.mubr.f32.mxu0 0.0
          %768 = vmatmul.mubr.f32.gmra.mrb[0].mxu0 %v678
          %v769 = vpop.f32.mrb[0].mxu0
          %v770 = vadd.f32 %v701, %v769
          %v771 = vpop.f32.mrb[0].mxu0
          %772 = vmatprep.mubr.f32.mxu0 0.0
          %773 = vmatmul.mubr.f32.gmra.mrb[0].mxu0 %v679
          %v774 = vpop.f32.mrb[0].mxu0
          %v775 = vadd.f32 %v701, %v774
          %v776 = vpop.f32.mrb[0].mxu0
          %777 = vdwg.mxu0
          %v778 = vld [vmem:[#allocation2] sm:$0xff]
          %v779 = vld [vmem:[#allocation2 + $0x8] sm:$0xff]
          %v780 = vld [vmem:[#allocation2 + $0x10] sm:$0xff]
          %v781 = vld [vmem:[#allocation2 + $0x18] sm:$0xff]
          %v782 = vxor.u32 %v770, 2147483648
          %v783 = vxor.u32 %v775, 2147483648
          %v784 = vmul.f32 %v782, 1.442695
          %v785 = vpow.pop %v784
          %v786 = vmul.f32 %v783, 1.442695
          %v787 = vpow.pop %v786
          %v788 = vadd.f32 %v785, 1.0
          %v789 = vadd.f32 %v787, 1.0
          %v790 = vrcp.pop %v788
          %v791 = vmul.f32 1.0, %v790
          %v792 = vrcp.pop %v789
          %v793 = vmul.f32 1.0, %v792
          %v794 = vmul.f32 %v791, %v778
          %v795 = vmul.f32 %v793, %v780
          %v796 = vrcp.pop %v779
          %v797 = vrcp.pop %v781
          %v798 = vmul.f32 %v794, %v796
          %v799 = vmul.f32 %v795, %v797
          %800 = vst [vmem:[%s418] sm:$0xff] %v798
          %801 = vst [vmem:[%s418 + $0x8] sm:$0xff] %v799
        $region72: #{tpu_custom_call.1} parent=47 // pred_fallthru
          _
        %s802 = sand.u32 %s225, 1
        %s803 = scalar_lea.sflag [#allocation6], %s802
        %s804 = sand.u32 %s225, 1
        %s805 = smul.addr %s804, 16
        %s806 = scalar_lea.vmem [#allocation12], %s805
        // Predicated region
        $region73: #{tpu_custom_call.1} parent=47 // pred_check
          %p807 = pneg %p235
        $region74: #{tpu_custom_call.1} parent=47 // pred_check_branch
          %809 = sbr.rel (%p807) target = $region76
        $region75: #{tpu_custom_call.1} parent=47 // pred_region
          %s810 = smul.u32 2, %s34
          %s812 = ssub.s32 256, 256
          %813 = vsyncadd %s803, %s812
          %s814 = smul.addr %s33, 2
          %s815 = sadd.s32 %s810, %s814
          %s816 = smul.addr %s815, 128
          %s817 = scalar_lea.hbm %s7, %s816
          %s818 = sshll.u32 %s806, 4
          %s819 = int_to_ptr.vmem [resolvable:$true] %s818
          %824 = dma.vmem_to_hbm [thread:$0]  %s819, 256, %s817, %s803, 128, 128, 8
        $region76: #{tpu_custom_call.1} parent=47 // pred_fallthru
          _
      $region48: #{tpu_custom_call.1} parent=5 // pred_fallthru
        _
      %p825 = scmp.le.s32.totalorder 2, %s23
      // Predicated region
      $region77: #{tpu_custom_call.1} parent=5 // pred_check
        %p826 = pneg %p825
      $region78: #{tpu_custom_call.1} parent=5 // pred_check_branch
        %828 = sbr.rel (%p826) target = $region80
      $region79: #{tpu_custom_call.1} parent=5 // pred_region
        %s829 = ssub.s32 %s23, 2
        // Predicated region
        $region81: #{tpu_custom_call.1} parent=79 // pred_check
          %p830 = pneg %p241
        $region82: #{tpu_custom_call.1} parent=79 // pred_check_branch
          %832 = sbr.rel (%p830) target = $region84
        $region83: #{tpu_custom_call.1} parent=79 // pred_region
          %s833 = sand.u32 %s226, 1
          %s834 = scalar_lea.sflag [#allocation6], %s833
          %s835 = sand.u32 %s226, 1
          %s836 = smul.addr %s835, 16
          %s837 = scalar_lea.vmem [#allocation12], %s836
          %838 = dma.done %s834, 256
        $region84: #{tpu_custom_call.1} parent=79 // pred_fallthru
          _
      $region80: #{tpu_custom_call.1} parent=5 // pred_fallthru
        _
    $region6: #{tpu_custom_call.1} parent=1 // loop_footer
      %s27 = sadd.s32 1, %s23
    $region7: #{tpu_custom_call.1} parent=1 // loop_footer_branch
      %22 = sbr.rel target = $region3
    $region8: #{tpu_custom_call.1} parent=1 // loop_exit
      _
    %839 = vsyncpa [#allocation5], 1
    %s840 = scalar_lea.sflag [#allocation5], 1
    %841 = vsyncpa %s840, 1
    %842 = vsyncpa [#allocation8], 1
    %s843 = scalar_lea.sflag [#allocation8], 1
    %844 = vsyncpa %s843, 1
    %845 = vsyncpa [#allocation11], 1
    %846 = vsyncpa [#allocation6], 1
    %s847 = scalar_lea.sflag [#allocation6], 1
    %848 = vsyncpa %s847, 1

</llo_original>
